<compile_context>
chip_gen: v6e
topology: v6e:2x2x1
jax: 0.10.0
libtpu: 0.0.40
codegen_flags: <defaults>
</compile_context>

<pallas_src>
import functools

import jax
import jax.numpy as jnp
from jax.experimental import pallas as pl
from jax.experimental.pallas import tpu as pltpu

IN_F = 42            # true input feature count
H1, H2, H3 = 256, 128, 64
OUT_F = 28           # true output feature count
IN_PAD = 64          # 42 -> 64   (lane-friendly K for the first matmul, in-kernel pad)
W4_PAD = 128         # 28 -> 128  (MXU-friendly N for the last matmul; sliced before store)


def mlp_kernel(x_ref, w1_ref, b1_ref, w2_ref, b2_ref, w3_ref, b3_ref,
               w4_ref, b4_ref, o_ref):
    # Cast the raw f32 rows to bf16 and zero-pad 42 -> 64 feature lanes in VMEM.
    # (W1 rows 42..63 are zero, so the padded math is exact.)
    x = x_ref[...].astype(jnp.bfloat16)                     # (tb, 42)
    pad = jnp.zeros((x.shape[0], IN_PAD - IN_F), jnp.bfloat16)
    x = jnp.concatenate([x, pad], axis=-1)                  # (tb, 64)

    # hidden1 + relu   (dropout2 is identity at inference)
    h = jnp.dot(x, w1_ref[...], preferred_element_type=jnp.float32)
    h = jnp.maximum(h + b1_ref[...], 0.0)
    # hidden2 + relu   (dropout2 identity)
    h = jnp.dot(h.astype(jnp.bfloat16), w2_ref[...],
                preferred_element_type=jnp.float32)
    h = jnp.maximum(h + b2_ref[...], 0.0)
    # hidden3 + relu   (dropout1 identity)
    h = jnp.dot(h.astype(jnp.bfloat16), w3_ref[...],
                preferred_element_type=jnp.float32)
    h = jnp.maximum(h + b3_ref[...], 0.0)
    # output layer (no activation); W4 is padded to 128 lanes for the MXU,
    # only the first 28 lanes are real -> slice before the store so HBM
    # writeback is 28 f32 lanes/row.
    out = jnp.dot(h.astype(jnp.bfloat16), w4_ref[...],
                  preferred_element_type=jnp.float32)       # (tb, 128)
    o_ref[...] = (out[:, :OUT_F] + b4_ref[...]).astype(o_ref.dtype)


def _round_up(n, m):
    return (n + m - 1) // m * m


def _pick_tile(B, tb):
    """Batch tile: big to amortize step overhead, but >=2 grid steps for large B."""
    if B <= tb:
        return max(8, _round_up(B, 8))
    return max(8, min(tb, _round_up((B + 1) // 2, 8)))


def prepare_kernel_params(params):
    """Pad W1/W4 to MXU-friendly shapes; weights -> bf16, biases stay f32."""
    w1, b1 = params["hidden1"]
    w2, b2 = params["hidden2"]
    w3, b3 = params["hidden3"]
    w4, b4 = params["output"]
    w1p = jnp.zeros((IN_PAD, H1), jnp.float32).at[:IN_F, :].set(w1)
    w4p = jnp.zeros((H3, W4_PAD), jnp.float32).at[:, :OUT_F].set(w4)
    return (w1p.astype(jnp.bfloat16), b1,
            w2.astype(jnp.bfloat16), b2,
            w3.astype(jnp.bfloat16), b3,
            w4p.astype(jnp.bfloat16), b4)


@functools.partial(jax.jit, static_argnames=("tb",))
def dnn_landmark_forward(x, params, *, tb=2048):
    """x: (B, 42) float32. params: dict of (W, b) with W stored as (in, out)."""
    B = x.shape[0]
    tile = _pick_tile(B, tb)
    grid = (pl.cdiv(B, tile),)

    w1p, b1, w2b, b2, w3b, b3, w4p, b4 = prepare_kernel_params(params)

    def resident_spec(shape):
        # Weights/biases: whole array, same block every iteration -> VMEM-resident.
        return pl.BlockSpec(shape, lambda i: (0, 0))

    flops = 2 * B * (IN_PAD * H1 + H1 * H2 + H2 * H3 + H3 * W4_PAD)
    bytes_accessed = (
        B * IN_F * 4 + B * OUT_F * 4
        + (w1p.size + w2b.size + w3b.size + w4p.size) * 2
        + (b1.size + b2.size + b3.size + b4.size) * 4
    )

    out = pl.pallas_call(
        mlp_kernel,
        out_shape=jax.ShapeDtypeStruct((B, OUT_F), jnp.float32),
        grid=grid,
        in_specs=[
            pl.BlockSpec((tile, IN_F), lambda i: (i, 0)),   # raw f32 rows, no pre-pad
            resident_spec(w1p.shape), resident_spec(b1.shape),
            resident_spec(w2b.shape), resident_spec(b2.shape),
            resident_spec(w3b.shape), resident_spec(b3.shape),
            resident_spec(w4p.shape), resident_spec(b4.shape),
        ],
        out_specs=pl.BlockSpec((tile, OUT_F), lambda i: (i, 0)),
        compiler_params=pltpu.CompilerParams(
            dimension_semantics=("parallel",),
            vmem_limit_bytes=32 << 20,
        ),
        cost_estimate=pl.CostEstimate(
            flops=flops, transcendentals=0, bytes_accessed=bytes_accessed),
    )(x, w1p, b1, w2b, b2, w3b, b3, w4p, b4)

    return out  # exact (B, 28); no post-slice pass needed


def init_linear(key, fan_in, fan_out):
    """Deterministic init mimicking nn.Linear: U(-1/sqrt(fan_in), 1/sqrt(fan_in))."""
    kw, kb = jax.random.split(key)
    bound = 1.0 / jnp.sqrt(fan_in)
    # stored as (in, out) so the kernel computes x @ W (equiv. to x @ W_torch.T)
    w = jax.random.uniform(kw, (fan_in, fan_out), jnp.float32, -bound, bound)
    b = jax.random.uniform(kb, (1, fan_out), jnp.float32, -bound, bound)
    return w, b


def make_params(seed=0):
    k = jax.random.PRNGKey(seed)
    k1, k2, k3, k4 = jax.random.split(k, 4)
    return {
        "hidden1": init_linear(k1, 42, 256),
        "hidden2": init_linear(k2, 256, 128),
        "hidden3": init_linear(k3, 128, 64),
        "output":  init_linear(k4, 64, 28),
    }


def reference_forward_f32(x, params):
    """Plain-JAX f32 reference of the PyTorch forward (eval mode)."""
    w1, b1 = params["hidden1"]
    w2, b2 = params["hidden2"]
    w3, b3 = params["hidden3"]
    w4, b4 = params["output"]
    h = jnp.maximum(x @ w1 + b1, 0.0)
    h = jnp.maximum(h @ w2 + b2, 0.0)
    h = jnp.maximum(h @ w3 + b3, 0.0)
    return h @ w4 + b4


def reference_forward_bf16(x, params):
    """Reference matching the kernel's bf16-input / f32-accumulate matmul path."""
    def dot(a, w):
        return jnp.dot(a.astype(jnp.bfloat16), w.astype(jnp.bfloat16),
                       preferred_element_type=jnp.float32)
    w1, b1 = params["hidden1"]
    w2, b2 = params["hidden2"]
    w3, b3 = params["hidden3"]
    w4, b4 = params["output"]
    h = jnp.maximum(dot(x, w1) + b1, 0.0)
    h = jnp.maximum(dot(h, w2) + b2, 0.0)
    h = jnp.maximum(dot(h, w3) + b3, 0.0)
    return dot(h, w4) + b4


if __name__ == "__main__":
    key = jax.random.PRNGKey(0)
    params = make_params(seed=0)

    # Small-batch check (single tile).
    B = 8
    x = jax.random.normal(key, (B, IN_F), jnp.float32)
    out = jax.block_until_ready(dnn_landmark_forward(x, params))
    assert out.shape == (B, OUT_F), out.shape

    ref_matched = reference_forward_bf16(x, params)
    assert jnp.allclose(out, ref_matched, atol=2e-3, rtol=2e-3), (
        "mismatch vs bf16-matched reference, max err "
        f"{float(jnp.max(jnp.abs(out - ref_matched)))}")

    ref_f32 = reference_forward_f32(x, params)
    assert jnp.allclose(out, ref_f32, atol=5e-2, rtol=5e-2), (
        "mismatch vs f32 reference, max err "
        f"{float(jnp.max(jnp.abs(out - ref_f32)))}")

    # Multi-tile check with a partial last block (exercises masked read/write path).
    B2 = 300
    x2 = jax.random.normal(jax.random.PRNGKey(1), (B2, IN_F), jnp.float32)
    out2 = jax.block_until_ready(dnn_landmark_forward(x2, params, tb=128))
    assert out2.shape == (B2, OUT_F), out2.shape
    ref2 = reference_forward_bf16(x2, params)
    assert jnp.allclose(out2, ref2, atol=2e-3, rtol=2e-3), (
        "multi-tile mismatch vs bf16-matched reference, max err "
        f"{float(jnp.max(jnp.abs(out2 - ref2)))}")

    print("KERNEL_OK")
</pallas_src>

<mosaic_0001>
module attributes {stable_mosaic.version = 11 : i64} {
  func.func @mlp_kernel(%arg0: i32, %arg1: memref<8x42xf32, #tpu.memory_space<vmem>>, %arg2: memref<64x256xbf16, #tpu.memory_space<vmem>>, %arg3: memref<1x256xf32, #tpu.memory_space<vmem>>, %arg4: memref<256x128xbf16, #tpu.memory_space<vmem>>, %arg5: memref<1x128xf32, #tpu.memory_space<vmem>>, %arg6: memref<128x64xbf16, #tpu.memory_space<vmem>>, %arg7: memref<1x64xf32, #tpu.memory_space<vmem>>, %arg8: memref<64x128xbf16, #tpu.memory_space<vmem>>, %arg9: memref<1x28xf32, #tpu.memory_space<vmem>>, %arg10: memref<8x28xf32, #tpu.memory_space<vmem>>) attributes {dimension_semantics = [#tpu.dimension_semantics<parallel>], iteration_bounds = array<i64: 1>, scalar_prefetch = 0 : i64, scratch_operands = 0 : i64, tpu.core_type = #tpu.core_type<tc>, window_params = [{transform_indices = @transform_0, window_bounds = array<i64: 8, 42>}, {pipeline_mode = #tpu.pipeline_mode<synchronous>, transform_indices = @transform_1, window_bounds = array<i64: 64, 256>}, {pipeline_mode = #tpu.pipeline_mode<synchronous>, transform_indices = @transform_2, window_bounds = array<i64: 1, 256>}, {pipeline_mode = #tpu.pipeline_mode<synchronous>, transform_indices = @transform_3, window_bounds = array<i64: 256, 128>}, {pipeline_mode = #tpu.pipeline_mode<synchronous>, transform_indices = @transform_4, window_bounds = array<i64: 1, 128>}, {pipeline_mode = #tpu.pipeline_mode<synchronous>, transform_indices = @transform_5, window_bounds = array<i64: 128, 64>}, {pipeline_mode = #tpu.pipeline_mode<synchronous>, transform_indices = @transform_6, window_bounds = array<i64: 1, 64>}, {pipeline_mode = #tpu.pipeline_mode<synchronous>, transform_indices = @transform_7, window_bounds = array<i64: 64, 128>}, {pipeline_mode = #tpu.pipeline_mode<synchronous>, transform_indices = @transform_8, window_bounds = array<i64: 1, 28>}, {transform_indices = @transform_9, window_bounds = array<i64: 8, 28>}]} {
    %c0 = arith.constant 0 : index
    %c0_0 = arith.constant 0 : index
    %0 = vector.load %arg1[%c0, %c0_0] : memref<8x42xf32, #tpu.memory_space<vmem>>, vector<8x42xf32>
    %1 = arith.truncf %0 : vector<8x42xf32> to vector<8x42xbf16>
    %cst = arith.constant 0.000000e+00 : bf16
    %2 = vector.broadcast %cst : bf16 to vector<8x22xbf16>
    %3 = tpu.concatenate %1, %2 in 1 : vector<8x42xbf16>, vector<8x22xbf16> -> vector<8x64xbf16>
    %c0_1 = arith.constant 0 : index
    %c0_2 = arith.constant 0 : index
    %4 = vector.load %arg2[%c0_1, %c0_2] : memref<64x256xbf16, #tpu.memory_space<vmem>>, vector<64x256xbf16>
    %cst_3 = arith.constant dense<0.000000e+00> : vector<8x256xf32>
    %5 = tpu.matmul %3, %4, %cst_3 {dimension_numbers = #tpu.dot_dimension_numbers<[1], [0], [0], [1], [0, 0, 1, 1], [], []>} : vector<8x64xbf16>, vector<64x256xbf16>, vector<8x256xf32> -> vector<8x256xf32>
    %c0_4 = arith.constant 0 : index
    %c0_5 = arith.constant 0 : index
    %6 = vector.load %arg3[%c0_4, %c0_5] : memref<1x256xf32, #tpu.memory_space<vmem>>, vector<1x256xf32>
    %7 = vector.broadcast %6 : vector<1x256xf32> to vector<8x256xf32>
    %8 = arith.addf %5, %7 : vector<8x256xf32>
    %cst_6 = arith.constant 0.000000e+00 : f32
    %9 = vector.broadcast %cst_6 : f32 to vector<8x256xf32>
    %10 = arith.maximumf %8, %9 : vector<8x256xf32>
    %11 = arith.truncf %10 : vector<8x256xf32> to vector<8x256xbf16>
    %c0_7 = arith.constant 0 : index
    %c0_8 = arith.constant 0 : index
    %12 = vector.load %arg4[%c0_7, %c0_8] : memref<256x128xbf16, #tpu.memory_space<vmem>>, vector<256x128xbf16>
    %cst_9 = arith.constant dense<0.000000e+00> : vector<8x128xf32>
    %13 = tpu.matmul %11, %12, %cst_9 {dimension_numbers = #tpu.dot_dimension_numbers<[1], [0], [0], [1], [0, 0, 1, 1], [], []>} : vector<8x256xbf16>, vector<256x128xbf16>, vector<8x128xf32> -> vector<8x128xf32>
    %c0_10 = arith.constant 0 : index
    %c0_11 = arith.constant 0 : index
    %14 = vector.load %arg5[%c0_10, %c0_11] : memref<1x128xf32, #tpu.memory_space<vmem>>, vector<1x128xf32>
    %15 = vector.broadcast %14 : vector<1x128xf32> to vector<8x128xf32>
    %16 = arith.addf %13, %15 : vector<8x128xf32>
    %cst_12 = arith.constant 0.000000e+00 : f32
    %17 = vector.broadcast %cst_12 : f32 to vector<8x128xf32>
    %18 = arith.maximumf %16, %17 : vector<8x128xf32>
    %19 = arith.truncf %18 : vector<8x128xf32> to vector<8x128xbf16>
    %c0_13 = arith.constant 0 : index
    %c0_14 = arith.constant 0 : index
    %20 = vector.load %arg6[%c0_13, %c0_14] : memref<128x64xbf16, #tpu.memory_space<vmem>>, vector<128x64xbf16>
    %cst_15 = arith.constant dense<0.000000e+00> : vector<8x64xf32>
    %21 = tpu.matmul %19, %20, %cst_15 {dimension_numbers = #tpu.dot_dimension_numbers<[1], [0], [0], [1], [0, 0, 1, 1], [], []>} : vector<8x128xbf16>, vector<128x64xbf16>, vector<8x64xf32> -> vector<8x64xf32>
    %c0_16 = arith.constant 0 : index
    %c0_17 = arith.constant 0 : index
    %22 = vector.load %arg7[%c0_16, %c0_17] : memref<1x64xf32, #tpu.memory_space<vmem>>, vector<1x64xf32>
    %23 = vector.broadcast %22 : vector<1x64xf32> to vector<8x64xf32>
    %24 = arith.addf %21, %23 : vector<8x64xf32>
    %cst_18 = arith.constant 0.000000e+00 : f32
    %25 = vector.broadcast %cst_18 : f32 to vector<8x64xf32>
    %26 = arith.maximumf %24, %25 : vector<8x64xf32>
    %27 = arith.truncf %26 : vector<8x64xf32> to vector<8x64xbf16>
    %c0_19 = arith.constant 0 : index
    %c0_20 = arith.constant 0 : index
    %28 = vector.load %arg8[%c0_19, %c0_20] : memref<64x128xbf16, #tpu.memory_space<vmem>>, vector<64x128xbf16>
    %cst_21 = arith.constant dense<0.000000e+00> : vector<8x128xf32>
    %29 = tpu.matmul %27, %28, %cst_21 {dimension_numbers = #tpu.dot_dimension_numbers<[1], [0], [0], [1], [0, 0, 1, 1], [], []>} : vector<8x64xbf16>, vector<64x128xbf16>, vector<8x128xf32> -> vector<8x128xf32>
    %30 = vector.extract_strided_slice %29 {offsets = [0, 0], sizes = [8, 28], strides = [1, 1]} : vector<8x128xf32> to vector<8x28xf32>
    %c0_22 = arith.constant 0 : index
    %c0_23 = arith.constant 0 : index
    %31 = vector.load %arg9[%c0_22, %c0_23] : memref<1x28xf32, #tpu.memory_space<vmem>>, vector<1x28xf32>
    %32 = vector.broadcast %31 : vector<1x28xf32> to vector<8x28xf32>
    %33 = arith.addf %30, %32 : vector<8x28xf32>
    %c0_24 = arith.constant 0 : index
    %c0_25 = arith.constant 0 : index
    %34 = vector.load %arg10[%c0_24, %c0_25] : memref<8x28xf32, #tpu.memory_space<vmem>>, vector<8x28xf32>
    tpu.vector_store %arg10[%c0_24, %c0_25], %33 {strides = array<i32>} : memref<8x28xf32, #tpu.memory_space<vmem>>, vector<8x28xf32>,
    return
  }
  func.func @transform_0(%arg0: i32) -> (i32, i32) {
    %c0_i32 = arith.constant 0 : i32
    %c0_i32_0 = arith.constant 0 : i32
    return %arg0, %c0_i32 : i32, i32
  }
  func.func @transform_1(%arg0: i32) -> (i32, i32) {
    %c0_i32 = arith.constant 0 : i32
    %c0_i32_0 = arith.constant 0 : i32
    %c0_i32_1 = arith.constant 0 : i32
    return %c0_i32, %c0_i32_0 : i32, i32
  }
  func.func @transform_2(%arg0: i32) -> (i32, i32) {
    %c0_i32 = arith.constant 0 : i32
    %c0_i32_0 = arith.constant 0 : i32
    %c0_i32_1 = arith.constant 0 : i32
    return %c0_i32, %c0_i32_0 : i32, i32
  }
  func.func @transform_3(%arg0: i32) -> (i32, i32) {
    %c0_i32 = arith.constant 0 : i32
    %c0_i32_0 = arith.constant 0 : i32
    %c0_i32_1 = arith.constant 0 : i32
    return %c0_i32, %c0_i32_0 : i32, i32
  }
  func.func @transform_4(%arg0: i32) -> (i32, i32) {
    %c0_i32 = arith.constant 0 : i32
    %c0_i32_0 = arith.constant 0 : i32
    %c0_i32_1 = arith.constant 0 : i32
    return %c0_i32, %c0_i32_0 : i32, i32
  }
  func.func @transform_5(%arg0: i32) -> (i32, i32) {
    %c0_i32 = arith.constant 0 : i32
    %c0_i32_0 = arith.constant 0 : i32
    %c0_i32_1 = arith.constant 0 : i32
    return %c0_i32, %c0_i32_0 : i32, i32
  }
  func.func @transform_6(%arg0: i32) -> (i32, i32) {
    %c0_i32 = arith.constant 0 : i32
    %c0_i32_0 = arith.constant 0 : i32
    %c0_i32_1 = arith.constant 0 : i32
    return %c0_i32, %c0_i32_0 : i32, i32
  }
  func.func @transform_7(%arg0: i32) -> (i32, i32) {
    %c0_i32 = arith.constant 0 : i32
    %c0_i32_0 = arith.constant 0 : i32
    %c0_i32_1 = arith.constant 0 : i32
    return %c0_i32, %c0_i32_0 : i32, i32
  }
  func.func @transform_8(%arg0: i32) -> (i32, i32) {
    %c0_i32 = arith.constant 0 : i32
    %c0_i32_0 = arith.constant 0 : i32
    %c0_i32_1 = arith.constant 0 : i32
    return %c0_i32, %c0_i32_0 : i32, i32
  }
  func.func @transform_9(%arg0: i32) -> (i32, i32) {
    %c0_i32 = arith.constant 0 : i32
    %c0_i32_0 = arith.constant 0 : i32
    return %arg0, %c0_i32 : i32, i32
  }
}

</mosaic_0001>

<llo_original>
// kernel: dnn_landmark_forward.1
$region0: #{dnn_landmark_forward.1}
  #allocation0 [shape = 'u32[]', space=smem, size = 0x4, offset = 0x4, fixed_abs, tag = 'smem constant byte address 0x4 - core index']
  #allocation1 [shape = 'u32[144,128]{1,0:T(1,128)}', space=vmem, size = 0x12000, scoped, tag = 'internal scratch']
  %s0 = inlined_call_operand.vmem [shape: f32[8,42], index: 0, kind: input, shape index: {}]
  %s1 = inlined_call_operand.vmem [shape: bf16[64,256], index: 1, kind: input, shape index: {}]
  %s2 = inlined_call_operand.vmem [shape: f32[1,256], index: 2, kind: input, shape index: {}]
  %s3 = inlined_call_operand.vmem [shape: bf16[256,128], index: 3, kind: input, shape index: {}]
  %s4 = inlined_call_operand.vmem [shape: f32[1,128], index: 4, kind: input, shape index: {}]
  %s5 = inlined_call_operand.vmem [shape: bf16[128,64], index: 5, kind: input, shape index: {}]
  %s6 = inlined_call_operand.vmem [shape: f32[1,64], index: 6, kind: input, shape index: {}]
  %s7 = inlined_call_operand.vmem [shape: bf16[64,128], index: 7, kind: input, shape index: {}]
  %s8 = inlined_call_operand.vmem [shape: f32[1,28], index: 8, kind: input, shape index: {}]
  %s9 = inlined_call_operand.hbm [shape: f32[8,28], index: 9, kind: output, shape index: {}]
  %s10 = sld [smem:[#allocation0]]
  $region46: #{dnn_landmark_forward.1} parent=0
    _
  %s12 = ssub.s32 1, %s10
  %s13 = scalar_select 0, %s12, %s10
  $region1: #{dnn_landmark_forward.1} parent=0
    #allocation2 [shape = 'u8[4096]{0}', space=vmem, size = 0x1000, scoped, tag = 'output window, operand 0, single buffered']
    #allocation3 [shape = 's32[1]{0}', space=sflag, size = 0x4, scoped, tag = 'scoped memory for dnn_landmark_forward.1']
    %14 = vsyncpa [#allocation3], 0
    // Predicated region
    $region2: #{dnn_landmark_forward.1} parent=1 // pred_check
      _
    $region3: #{dnn_landmark_forward.1} parent=1 // pred_check_branch
      %16 = sbr.rel (0) target = $region5
    $region4: #{dnn_landmark_forward.1} parent=1 // pred_region
      _
    $region5: #{dnn_landmark_forward.1} parent=1 // pred_fallthru
      _
    // Predicated region
    $region6: #{dnn_landmark_forward.1} parent=1 // pred_check
      _
    $region7: #{dnn_landmark_forward.1} parent=1 // pred_check_branch
      %18 = sbr.rel (0) target = $region9
    $region8: #{dnn_landmark_forward.1} parent=1 // pred_region
      _
    $region9: #{dnn_landmark_forward.1} parent=1 // pred_fallthru
      _
    // Predicated region
    $region10: #{dnn_landmark_forward.1} parent=1 // pred_check
      _
    $region11: #{dnn_landmark_forward.1} parent=1 // pred_check_branch
      %20 = sbr.rel (0) target = $region13
    $region12: #{dnn_landmark_forward.1} parent=1 // pred_region
      _
    $region13: #{dnn_landmark_forward.1} parent=1 // pred_fallthru
      _
    // Predicated region
    $region14: #{dnn_landmark_forward.1} parent=1 // pred_check
      _
    $region15: #{dnn_landmark_forward.1} parent=1 // pred_check_branch
      %22 = sbr.rel (0) target = $region17
    $region16: #{dnn_landmark_forward.1} parent=1 // pred_region
      _
    $region17: #{dnn_landmark_forward.1} parent=1 // pred_fallthru
      _
    // Predicated region
    $region18: #{dnn_landmark_forward.1} parent=1 // pred_check
      _
    $region19: #{dnn_landmark_forward.1} parent=1 // pred_check_branch
      %24 = sbr.rel (0) target = $region21
    $region20: #{dnn_landmark_forward.1} parent=1 // pred_region
      _
    $region21: #{dnn_landmark_forward.1} parent=1 // pred_fallthru
      _
    // Predicated region
    $region22: #{dnn_landmark_forward.1} parent=1 // pred_check
      _
    $region23: #{dnn_landmark_forward.1} parent=1 // pred_check_branch
      %26 = sbr.rel (0) target = $region25
    $region24: #{dnn_landmark_forward.1} parent=1 // pred_region
      _
    $region25: #{dnn_landmark_forward.1} parent=1 // pred_fallthru
      _
    // Predicated region
    $region26: #{dnn_landmark_forward.1} parent=1 // pred_check
      _
    $region27: #{dnn_landmark_forward.1} parent=1 // pred_check_branch
      %28 = sbr.rel (0) target = $region29
    $region28: #{dnn_landmark_forward.1} parent=1 // pred_region
      _
    $region29: #{dnn_landmark_forward.1} parent=1 // pred_fallthru
      _
    // Predicated region
    $region30: #{dnn_landmark_forward.1} parent=1 // pred_check
      _
    $region31: #{dnn_landmark_forward.1} parent=1 // pred_check_branch
      %30 = sbr.rel (0) target = $region33
    $region32: #{dnn_landmark_forward.1} parent=1 // pred_region
      _
    $region33: #{dnn_landmark_forward.1} parent=1 // pred_fallthru
      _
    // Predicated region
    $region34: #{dnn_landmark_forward.1} parent=1 // pred_check
      _
    $region35: #{dnn_landmark_forward.1} parent=1 // pred_check_branch
      %32 = sbr.rel (0) target = $region37
    $region36: #{dnn_landmark_forward.1} parent=1 // pred_region
      _
    $region37: #{dnn_landmark_forward.1} parent=1 // pred_fallthru
      _
    %v34 = vld [vmem:[%s0] sm:$0xff]
    %v35 = vpack.c.bf16 %v34, %v34
    %vm36 = vcmask 343040
    %v39 = vsel %vm36, %v35, 0
    %v40 = vld [vmem:[%s1] sm:$0xff]
    %v41 = vld [vmem:[%s1 + $0x8] sm:$0xff]
    %v42 = vld [vmem:[%s1 + $0x10] sm:$0xff]
    %v43 = vld [vmem:[%s1 + $0x18] sm:$0xff]
    %v44 = vld [vmem:[%s1 + $0x20] sm:$0xff]
    %v45 = vld [vmem:[%s1 + $0x28] sm:$0xff]
    %v46 = vld [vmem:[%s1 + $0x30] sm:$0xff]
    %v47 = vld [vmem:[%s1 + $0x38] sm:$0xff]
    %v48 = vld [vmem:[%s2] sm:$0x3]
    %v50 = vlaneseq
    %v51 = vshrl.u32 %v50, 7
    %v52 = vsub.s32 0, %v51
    %v53 = vrot.slane %v48, %v52
    %v54 = vlaneseq
    %v55 = vshrl.u32 %v54, 7
    %v56 = vsub.s32 1, %v55
    %v57 = vrot.slane %v48, %v56
    %v68 = vunpack.c.l.b16 %v40
    %v69 = vunpack.c.h.b16 %v40
    %v70 = vunpack.c.l.b16 %v41
    %v71 = vunpack.c.h.b16 %v41
    %v72 = vunpack.c.l.b16 %v42
    %v73 = vunpack.c.h.b16 %v42
    %v74 = vunpack.c.l.b16 %v43
    %v75 = vunpack.c.h.b16 %v43
    %v76 = vunpack.c.l.b16 %v44
    %v77 = vunpack.c.h.b16 %v44
    %v78 = vunpack.c.l.b16 %v45
    %v79 = vunpack.c.h.b16 %v45
    %v80 = vunpack.c.l.b16 %v46
    %v81 = vunpack.c.h.b16 %v46
    %v82 = vunpack.c.l.b16 %v47
    %v83 = vunpack.c.h.b16 %v47
    %v84 = vpack.c.b16 %v70, %v68
    %v85 = vpack.c.b16 %v71, %v69
    %v86 = vpack.c.b16 %v74, %v72
    %v87 = vpack.c.b16 %v75, %v73
    %v88 = vpack.c.b16 %v78, %v76
    %v89 = vpack.c.b16 %v79, %v77
    %v90 = vpack.c.b16 %v82, %v80
    %v91 = vpack.c.b16 %v83, %v81
    %vm100 = vcmask 523264
    %v101 = vsel %vm100, %v39, 0
    %103 = vmatprep.subr.bf16.mxu0 0
    %104 = vmatpush1.bf16.msra.mxu0 0
    %105 = vmatprep.subr.bf16.mxu0 0
    %106 = vmatpush1.bf16.msra.mxu0 0
    %107 = vmatprep.subr.bf16.mxu0 0
    %108 = vmatpush1.bf16.msra.mxu0 0
    %109 = vmatprep.subr.bf16.mxu0 0
    %110 = vmatpush1.bf16.msra.mxu0 0
    %111 = vmatprep.subr.bf16.mxu0 %v91
    %112 = vmatpush1.bf16.msra.mxu0 %v90
    %113 = vmatprep.subr.bf16.mxu0 %v89
    %114 = vmatpush1.bf16.msra.mxu0 %v88
    %115 = vmatprep.subr.bf16.mxu0 %v87
    %116 = vmatpush1.bf16.msra.mxu0 %v86
    %117 = vmatprep.subr.bf16.mxu0 %v85
    %118 = vmatpush1.bf16.msra.mxu0 %v84
    %119 = vmatprep.subr.bf16.mxu0 0
    %120 = vmatpush2.bf16.msra.mxu0 0
    %121 = vmatprep.subr.bf16.mxu0 0
    %122 = vmatpush2.bf16.msra.mxu0 0
    %123 = vmatprep.subr.bf16.mxu0 0
    %124 = vmatpush2.bf16.msra.mxu0 0
    %125 = vmatprep.subr.bf16.mxu0 0
    %126 = vmatpush2.bf16.msra.mxu0 0
    %127 = vmatprep.subr.bf16.mxu0 0
    %128 = vmatpush2.bf16.msra.mxu0 0
    %129 = vmatprep.subr.bf16.mxu0 0
    %130 = vmatpush2.bf16.msra.mxu0 0
    %131 = vmatprep.subr.bf16.mxu0 0
    %132 = vmatpush2.bf16.msra.mxu0 0
    %133 = vmatprep.subr.bf16.mxu0 0
    %134 = vmatpush2.bf16.msra.mxu0 0
    %135 = vmatprep.mubr.bf16.mxu0 0
    %136 = vmatmul.mubr.bf16.gmra.mxu0 %v101
    %v137 = vpop.f32.mrf.mxu0
    %v138 = vadd.f32 %v53, %v137
    %v139 = vpop.f32.mrf.mxu0
    %v140 = vadd.f32 %v57, %v139
    %v141 = vpop.f32.mrf.mxu0
    %v142 = vpop.f32.mrf.mxu0
    %143 = vdwg.mxu0
    %v144 = vmax.f32 %v138, 0.0
    %v145 = vmax.f32 %v140, 0.0
    %v146 = vpack.c.bf16 %v144, %v144
    %v147 = vpack.c.bf16 %v145, %v145
    %v148 = vld [vmem:[%s3] sm:$0xf]
    %v149 = vld [vmem:[%s3 + $0x4] sm:$0xf]
    %v150 = vld [vmem:[%s3 + $0x8] sm:$0xf]
    %v151 = vld [vmem:[%s3 + $0xc] sm:$0xf]
    %v152 = vld [vmem:[%s3 + $0x10] sm:$0xf]
    %v153 = vld [vmem:[%s3 + $0x14] sm:$0xf]
    %v154 = vld [vmem:[%s3 + $0x18] sm:$0xf]
    %v155 = vld [vmem:[%s3 + $0x1c] sm:$0xf]
    %v156 = vld [vmem:[%s3 + $0x20] sm:$0xf]
    %v157 = vld [vmem:[%s3 + $0x24] sm:$0xf]
    %v158 = vld [vmem:[%s3 + $0x28] sm:$0xf]
    %v159 = vld [vmem:[%s3 + $0x2c] sm:$0xf]
    %v160 = vld [vmem:[%s3 + $0x30] sm:$0xf]
    %v161 = vld [vmem:[%s3 + $0x34] sm:$0xf]
    %v162 = vld [vmem:[%s3 + $0x38] sm:$0xf]
    %v163 = vld [vmem:[%s3 + $0x3c] sm:$0xf]
    %v164 = vld [vmem:[%s3 + $0x40] sm:$0xf]
    %v165 = vld [vmem:[%s3 + $0x44] sm:$0xf]
    %v166 = vld [vmem:[%s3 + $0x48] sm:$0xf]
    %v167 = vld [vmem:[%s3 + $0x4c] sm:$0xf]
    %v168 = vld [vmem:[%s3 + $0x50] sm:$0xf]
    %v169 = vld [vmem:[%s3 + $0x54] sm:$0xf]
    %v170 = vld [vmem:[%s3 + $0x58] sm:$0xf]
    %v171 = vld [vmem:[%s3 + $0x5c] sm:$0xf]
    %v172 = vld [vmem:[%s3 + $0x60] sm:$0xf]
    %v173 = vld [vmem:[%s3 + $0x64] sm:$0xf]
    %v174 = vld [vmem:[%s3 + $0x68] sm:$0xf]
    %v175 = vld [vmem:[%s3 + $0x6c] sm:$0xf]
    %v176 = vld [vmem:[%s3 + $0x70] sm:$0xf]
    %v177 = vld [vmem:[%s3 + $0x74] sm:$0xf]
    %v178 = vld [vmem:[%s3 + $0x78] sm:$0xf]
    %v179 = vld [vmem:[%s3 + $0x7c] sm:$0xf]
    %v180 = vld [vmem:[%s4] sm:$0x1]
    %v182 = vlaneseq
    %v183 = vshrl.u32 %v182, 7
    %v184 = vsub.s32 0, %v183
    %v185 = vrot.slane %v180, %v184
    %v219 = vunpack.c.l.b16 %v148
    %v220 = vunpack.c.l.b16 %v149
    %v221 = vunpack.c.l.b16 %v150
    %v222 = vunpack.c.l.b16 %v151
    %v223 = vunpack.c.l.b16 %v152
    %v224 = vunpack.c.l.b16 %v153
    %v225 = vunpack.c.l.b16 %v154
    %v226 = vunpack.c.l.b16 %v155
    %v227 = vunpack.c.l.b16 %v156
    %v228 = vunpack.c.l.b16 %v157
    %v229 = vunpack.c.l.b16 %v158
    %v230 = vunpack.c.l.b16 %v159
    %v231 = vunpack.c.l.b16 %v160
    %v232 = vunpack.c.l.b16 %v161
    %v233 = vunpack.c.l.b16 %v162
    %v234 = vunpack.c.l.b16 %v163
    %v235 = vunpack.c.l.b16 %v164
    %v236 = vunpack.c.l.b16 %v165
    %v237 = vunpack.c.l.b16 %v166
    %v238 = vunpack.c.l.b16 %v167
    %v239 = vunpack.c.l.b16 %v168
    %v240 = vunpack.c.l.b16 %v169
    %v241 = vunpack.c.l.b16 %v170
    %v242 = vunpack.c.l.b16 %v171
    %v243 = vunpack.c.l.b16 %v172
    %v244 = vunpack.c.l.b16 %v173
    %v245 = vunpack.c.l.b16 %v174
    %v246 = vunpack.c.l.b16 %v175
    %v247 = vunpack.c.l.b16 %v176
    %v248 = vunpack.c.l.b16 %v177
    %v249 = vunpack.c.l.b16 %v178
    %v250 = vunpack.c.l.b16 %v179
    %v251 = vpack.c.b16 %v220, %v219
    %v252 = vpack.c.b16 %v222, %v221
    %v253 = vpack.c.b16 %v224, %v223
    %v254 = vpack.c.b16 %v226, %v225
    %v255 = vpack.c.b16 %v228, %v227
    %v256 = vpack.c.b16 %v230, %v229
    %v257 = vpack.c.b16 %v232, %v231
    %v258 = vpack.c.b16 %v234, %v233
    %v259 = vpack.c.b16 %v236, %v235
    %v260 = vpack.c.b16 %v238, %v237
    %v261 = vpack.c.b16 %v240, %v239
    %v262 = vpack.c.b16 %v242, %v241
    %v263 = vpack.c.b16 %v244, %v243
    %v264 = vpack.c.b16 %v246, %v245
    %v265 = vpack.c.b16 %v248, %v247
    %v266 = vpack.c.b16 %v250, %v249
    %283 = vmatprep.subr.bf16.mxu0 0
    %284 = vmatpush1.bf16.msra.mxu0 %v258
    %285 = vmatprep.subr.bf16.mxu0 0
    %286 = vmatpush1.bf16.msra.mxu0 %v257
    %287 = vmatprep.subr.bf16.mxu0 0
    %288 = vmatpush1.bf16.msra.mxu0 %v256
    %289 = vmatprep.subr.bf16.mxu0 0
    %290 = vmatpush1.bf16.msra.mxu0 %v255
    %291 = vmatprep.subr.bf16.mxu0 0
    %292 = vmatpush1.bf16.msra.mxu0 %v254
    %293 = vmatprep.subr.bf16.mxu0 0
    %294 = vmatpush1.bf16.msra.mxu0 %v253
    %295 = vmatprep.subr.bf16.mxu0 0
    %296 = vmatpush1.bf16.msra.mxu0 %v252
    %297 = vmatprep.subr.bf16.mxu0 0
    %298 = vmatpush1.bf16.msra.mxu0 %v251
    %299 = vmatprep.subr.bf16.mxu0 0
    %300 = vmatpush2.bf16.msra.mxu0 %v266
    %301 = vmatprep.subr.bf16.mxu0 0
    %302 = vmatpush2.bf16.msra.mxu0 %v265
    %303 = vmatprep.subr.bf16.mxu0 0
    %304 = vmatpush2.bf16.msra.mxu0 %v264
    %305 = vmatprep.subr.bf16.mxu0 0
    %306 = vmatpush2.bf16.msra.mxu0 %v263
    %307 = vmatprep.subr.bf16.mxu0 0
    %308 = vmatpush2.bf16.msra.mxu0 %v262
    %309 = vmatprep.subr.bf16.mxu0 0
    %310 = vmatpush2.bf16.msra.mxu0 %v261
    %311 = vmatprep.subr.bf16.mxu0 0
    %312 = vmatpush2.bf16.msra.mxu0 %v260
    %313 = vmatprep.subr.bf16.mxu0 0
    %314 = vmatpush2.bf16.msra.mxu0 %v259
    %315 = vmatprep.mubr.bf16.mxu0 %v147
    %316 = vmatmul.mubr.bf16.gmra.mxu0 %v146
    %v317 = vpop.f32.mrf.mxu0
    %v318 = vadd.f32 %v185, %v317
    %v319 = vpop.f32.mrf.mxu0
    %v320 = vpop.f32.mrf.mxu0
    %v321 = vpop.f32.mrf.mxu0
    %322 = vdwg.mxu0
    %v323 = vmax.f32 %v318, 0.0
    %v324 = vpack.c.bf16 %v323, %v323
    %v325 = vld [vmem:[%s5] sm:$0xf]
    %v326 = vld [vmem:[%s5 + $0x4] sm:$0xf]
    %v327 = vld [vmem:[%s5 + $0x8] sm:$0xf]
    %v328 = vld [vmem:[%s5 + $0xc] sm:$0xf]
    %v329 = vld [vmem:[%s5 + $0x10] sm:$0xf]
    %v330 = vld [vmem:[%s5 + $0x14] sm:$0xf]
    %v331 = vld [vmem:[%s5 + $0x18] sm:$0xf]
    %v332 = vld [vmem:[%s5 + $0x1c] sm:$0xf]
    %v333 = vld [vmem:[%s5 + $0x20] sm:$0xf]
    %v334 = vld [vmem:[%s5 + $0x24] sm:$0xf]
    %v335 = vld [vmem:[%s5 + $0x28] sm:$0xf]
    %v336 = vld [vmem:[%s5 + $0x2c] sm:$0xf]
    %v337 = vld [vmem:[%s5 + $0x30] sm:$0xf]
    %v338 = vld [vmem:[%s5 + $0x34] sm:$0xf]
    %v339 = vld [vmem:[%s5 + $0x38] sm:$0xf]
    %v340 = vld [vmem:[%s5 + $0x3c] sm:$0xf]
    %v341 = vld [vmem:[%s6] sm:$0x1]
    %v343 = vlaneseq
    %v344 = vshrl.u32 %v343, 7
    %v345 = vsub.s32 0, %v344
    %v346 = vrot.slane %v341, %v345
    %v364 = vunpack.c.l.b16 %v325
    %v365 = vunpack.c.l.b16 %v326
    %v366 = vunpack.c.l.b16 %v327
    %v367 = vunpack.c.l.b16 %v328
    %v368 = vunpack.c.l.b16 %v329
    %v369 = vunpack.c.l.b16 %v330
    %v370 = vunpack.c.l.b16 %v331
    %v371 = vunpack.c.l.b16 %v332
    %v372 = vunpack.c.l.b16 %v333
    %v373 = vunpack.c.l.b16 %v334
    %v374 = vunpack.c.l.b16 %v335
    %v375 = vunpack.c.l.b16 %v336
    %v376 = vunpack.c.l.b16 %v337
    %v377 = vunpack.c.l.b16 %v338
    %v378 = vunpack.c.l.b16 %v339
    %v379 = vunpack.c.l.b16 %v340
    %v380 = vpack.c.b16 %v365, %v364
    %v381 = vpack.c.b16 %v367, %v366
    %v382 = vpack.c.b16 %v369, %v368
    %v383 = vpack.c.b16 %v371, %v370
    %v384 = vpack.c.b16 %v373, %v372
    %v385 = vpack.c.b16 %v375, %v374
    %v386 = vpack.c.b16 %v377, %v376
    %v387 = vpack.c.b16 %v379, %v378
    %396 = vmatprep.subr.bf16.mxu0 0
    %397 = vmatpush1.bf16.msra.mxu0 %v387
    %398 = vmatprep.subr.bf16.mxu0 0
    %399 = vmatpush1.bf16.msra.mxu0 %v386
    %400 = vmatprep.subr.bf16.mxu0 0
    %401 = vmatpush1.bf16.msra.mxu0 %v385
    %402 = vmatprep.subr.bf16.mxu0 0
    %403 = vmatpush1.bf16.msra.mxu0 %v384
    %404 = vmatprep.subr.bf16.mxu0 0
    %405 = vmatpush1.bf16.msra.mxu0 %v383
    %406 = vmatprep.subr.bf16.mxu0 0
    %407 = vmatpush1.bf16.msra.mxu0 %v382
    %408 = vmatprep.subr.bf16.mxu0 0
    %409 = vmatpush1.bf16.msra.mxu0 %v381
    %410 = vmatprep.subr.bf16.mxu0 0
    %411 = vmatpush1.bf16.msra.mxu0 %v380
    %412 = vmatprep.subr.bf16.mxu0 0
    %413 = vmatpush2.bf16.msra.mxu0 0
    %414 = vmatprep.subr.bf16.mxu0 0
    %415 = vmatpush2.bf16.msra.mxu0 0
    %416 = vmatprep.subr.bf16.mxu0 0
    %417 = vmatpush2.bf16.msra.mxu0 0
    %418 = vmatprep.subr.bf16.mxu0 0
    %419 = vmatpush2.bf16.msra.mxu0 0
    %420 = vmatprep.subr.bf16.mxu0 0
    %421 = vmatpush2.bf16.msra.mxu0 0
    %422 = vmatprep.subr.bf16.mxu0 0
    %423 = vmatpush2.bf16.msra.mxu0 0
    %424 = vmatprep.subr.bf16.mxu0 0
    %425 = vmatpush2.bf16.msra.mxu0 0
    %426 = vmatprep.subr.bf16.mxu0 0
    %427 = vmatpush2.bf16.msra.mxu0 0
    %428 = vmatprep.mubr.bf16.mxu0 0
    %429 = vmatmul.mubr.bf16.gmra.mxu0 %v324
    %v430 = vpop.f32.mrf.mxu0
    %v431 = vadd.f32 %v346, %v430
    %v432 = vpop.f32.mrf.mxu0
    %v433 = vpop.f32.mrf.mxu0
    %v434 = vpop.f32.mrf.mxu0
    %435 = vdwg.mxu0
    %v436 = vmax.f32 %v431, 0.0
    %v437 = vpack.c.bf16 %v436, %v436
    %v438 = vld [vmem:[%s7] sm:$0xf]
    %v439 = vld [vmem:[%s7 + $0x4] sm:$0xf]
    %v440 = vld [vmem:[%s7 + $0x8] sm:$0xf]
    %v441 = vld [vmem:[%s7 + $0xc] sm:$0xf]
    %v442 = vld [vmem:[%s7 + $0x10] sm:$0xf]
    %v443 = vld [vmem:[%s7 + $0x14] sm:$0xf]
    %v444 = vld [vmem:[%s7 + $0x18] sm:$0xf]
    %v445 = vld [vmem:[%s7 + $0x1c] sm:$0xf]
    %v454 = vunpack.c.l.b16 %v438
    %v455 = vunpack.c.l.b16 %v439
    %v456 = vunpack.c.l.b16 %v440
    %v457 = vunpack.c.l.b16 %v441
    %v458 = vunpack.c.l.b16 %v442
    %v459 = vunpack.c.l.b16 %v443
    %v460 = vunpack.c.l.b16 %v444
    %v461 = vunpack.c.l.b16 %v445
    %v462 = vpack.c.b16 %v455, %v454
    %v463 = vpack.c.b16 %v457, %v456
    %v464 = vpack.c.b16 %v459, %v458
    %v465 = vpack.c.b16 %v461, %v460
    %v471 = vsel %vm100, %v437, 0
    %473 = vmatprep.subr.bf16.mxu0 0
    %474 = vmatpush1.bf16.msra.mxu0 0
    %475 = vmatprep.subr.bf16.mxu0 0
    %476 = vmatpush1.bf16.msra.mxu0 0
    %477 = vmatprep.subr.bf16.mxu0 0
    %478 = vmatpush1.bf16.msra.mxu0 0
    %479 = vmatprep.subr.bf16.mxu0 0
    %480 = vmatpush1.bf16.msra.mxu0 0
    %481 = vmatprep.subr.bf16.mxu0 0
    %482 = vmatpush1.bf16.msra.mxu0 %v465
    %483 = vmatprep.subr.bf16.mxu0 0
    %484 = vmatpush1.bf16.msra.mxu0 %v464
    %485 = vmatprep.subr.bf16.mxu0 0
    %486 = vmatpush1.bf16.msra.mxu0 %v463
    %487 = vmatprep.subr.bf16.mxu0 0
    %488 = vmatpush1.bf16.msra.mxu0 %v462
    %489 = vmatprep.subr.bf16.mxu0 0
    %490 = vmatpush2.bf16.msra.mxu0 0
    %491 = vmatprep.subr.bf16.mxu0 0
    %492 = vmatpush2.bf16.msra.mxu0 0
    %493 = vmatprep.subr.bf16.mxu0 0
    %494 = vmatpush2.bf16.msra.mxu0 0
    %495 = vmatprep.subr.bf16.mxu0 0
    %496 = vmatpush2.bf16.msra.mxu0 0
    %497 = vmatprep.subr.bf16.mxu0 0
    %498 = vmatpush2.bf16.msra.mxu0 0
    %499 = vmatprep.subr.bf16.mxu0 0
    %500 = vmatpush2.bf16.msra.mxu0 0
    %501 = vmatprep.subr.bf16.mxu0 0
    %502 = vmatpush2.bf16.msra.mxu0 0
    %503 = vmatprep.subr.bf16.mxu0 0
    %504 = vmatpush2.bf16.msra.mxu0 0
    %505 = vmatprep.mubr.bf16.mxu0 0
    %506 = vmatmul.mubr.bf16.gmra.mxu0 %v471
    %v507 = vpop.f32.mrf.mxu0
    %v508 = vadd.f32 0.0, %v507
    %v509 = vpop.f32.mrf.mxu0
    %v510 = vpop.f32.mrf.mxu0
    %v511 = vpop.f32.mrf.mxu0
    %512 = vdwg.mxu0
    %v513 = vld [vmem:[%s8] sm:$0x1]
    %v515 = vlaneseq
    %v516 = vshrl.u32 %v515, 7
    %v517 = vsub.s32 0, %v516
    %v518 = vrot.slane %v513, %v517
    %v520 = vadd.f32 %v508, %v518
    %vm521 = vcmask 228352
    %522 = vst.msk [vmem:[#allocation2] sm:$0xff] %vm521, %v520
    // Predicated region
    $region38: #{dnn_landmark_forward.1} parent=1 // pred_check
      _
    $region39: #{dnn_landmark_forward.1} parent=1 // pred_check_branch
      %524 = sbr.rel (0) target = $region41
    $region40: #{dnn_landmark_forward.1} parent=1 // pred_region
      %s526 = ssub.s32 128, 128
      %527 = vsyncadd [#allocation3], %s526
      %s529 = sshll.u32 [#allocation2], 4
      %s530 = int_to_ptr.vmem [resolvable:$true] %s529
      %532 = dma.vmem_to_hbm [thread:$0]  %s530, 128, %s9, [#allocation3]
    $region41: #{dnn_landmark_forward.1} parent=1 // pred_fallthru
      _
    // Predicated region
    $region42: #{dnn_landmark_forward.1} parent=1 // pred_check
      _
    $region43: #{dnn_landmark_forward.1} parent=1 // pred_check_branch
      %534 = sbr.rel (0) target = $region45
    $region44: #{dnn_landmark_forward.1} parent=1 // pred_region
      %535 = dma.done [#allocation3], 128
    $region45: #{dnn_landmark_forward.1} parent=1 // pred_fallthru
      _
    %536 = vsyncpa [#allocation3], 1

</llo_original>
